<compile_context>
chip_gen: v5e
topology: v5e:2x2
jax: 0.10.0
libtpu: 0.0.40
codegen_flags: <defaults>
</compile_context>

<pallas_src>
import jax
import jax.numpy as jnp
from jax.experimental import pallas as pl
from jax.experimental.pallas import tpu as pltpu


def _round_up(x, m):
    return ((x + m - 1) // m) * m


# ---------------------------------------------------------------------------
# Kernel bodies (feature-major layout: row tiles are (K+2, TILE_N))
# ---------------------------------------------------------------------------

def _compute_tile(x_ref, w_beta_ref, kvec_ref, hvec_ref, w2_ref):
    K = w_beta_ref.shape[0]
    f32 = jnp.float32

    # static slices of the fused input slab (rows 0..K-1 betas, K theta, K+1 alpha)
    betas = x_ref[0:K, :].astype(f32)              # (K, T)
    theta_row = x_ref[K:K + 1, :].astype(f32)      # (1, T)
    alpha_row = x_ref[K + 1:K + 2, :].astype(f32)  # (1, T)

    # packed per-K constants: columns = (tau_bias, refine_w, refine_b, aw_b2)
    kvec = kvec_ref[...]
    tau_bias = kvec[:, 0:1]
    rw = kvec[:, 1:2]
    rb = kvec[:, 2:3]
    b2 = kvec[:, 3:4]
    # packed per-2K constants: columns = (w1_theta, w1_alpha, aw_b1)
    hvec = hvec_ref[...]
    w1_theta = hvec[:, 0:1]
    w1_alpha = hvec[:, 1:2]
    b1 = hvec[:, 2:3]

    # refinement = tanh(Wr_beta @ betas + (Wr_tau @ taus + br))  -- tau folded
    pre = jnp.dot(w_beta_ref[...], betas, preferred_element_type=f32) + tau_bias
    refinement = jnp.tanh(pre)

    # scaled_refinement = refinement_weights * refinement + refinement_bias
    scaled = rw * refinement + rb

    # adaptive weighting: Linear(2 -> 2K) as two VPU FMAs, ReLU, Linear(2K -> K)
    h = jnp.maximum(w1_theta * theta_row + w1_alpha * alpha_row + b1, 0.0)  # (2K, T)
    z = jnp.dot(w2_ref[...], h, preferred_element_type=f32) + b2           # (K, T)
    # sigmoid(z) == 0.5 * tanh(0.5 z) + 0.5 : single EUP transcendental
    aw = 0.5 * jnp.tanh(0.5 * z) + 0.5

    unified = betas + aw * scaled
    return unified, scaled, aw, refinement


def _coupler_fast_kernel(x_ref, w_beta_ref, kvec_ref, hvec_ref, w2_ref,
                         unified_ref):
    u, _, _, _ = _compute_tile(x_ref, w_beta_ref, kvec_ref, hvec_ref, w2_ref)
    unified_ref[...] = u


def _coupler_full_kernel(x_ref, w_beta_ref, kvec_ref, hvec_ref, w2_ref,
                         out_ref):
    # single stacked output: rows [0:K]=unified [K:2K]=scaled [2K:3K]=aw [3K:4K]=refinement
    K = w_beta_ref.shape[0]
    u, s, a, r = _compute_tile(x_ref, w_beta_ref, kvec_ref, hvec_ref, w2_ref)
    out_ref[0 * K:1 * K, :] = u
    out_ref[1 * K:2 * K, :] = s
    out_ref[2 * K:3 * K, :] = a
    out_ref[3 * K:4 * K, :] = r


# ---------------------------------------------------------------------------
# Parameter init (deterministic re-implementation of _init_weights)
# ---------------------------------------------------------------------------

def init_params(key, n_thresholds):
    K = n_thresholds
    k1, k2, k3, k4 = jax.random.split(key, 4)
    return {
        # nn.init.normal_(refinement_weights, 1.0, 0.1)
        "refinement_weights": (1.0 + 0.1 * jax.random.normal(k1, (K,))).astype(jnp.float32),
        "refinement_bias": jnp.zeros((K,), jnp.float32),
        # adaptive_weighting: Linear(2, 2K) -> ReLU -> Linear(2K, K) -> Sigmoid
        # kaiming_normal_ (fan_in): std = sqrt(2 / fan_in); torch layout (out, in)
        "aw_w1": (jax.random.normal(k2, (2 * K, 2)) * jnp.sqrt(2.0 / 2.0)).astype(jnp.float32),
        "aw_b1": jnp.zeros((2 * K,), jnp.float32),
        "aw_w2": (jax.random.normal(k3, (K, 2 * K)) * jnp.sqrt(2.0 / (2 * K))).astype(jnp.float32),
        "aw_b2": jnp.zeros((K,), jnp.float32),
        # refinement_network: Linear(2K, K) -> Tanh
        "refine_w": (jax.random.normal(k4, (K, 2 * K)) * jnp.sqrt(2.0 / (2 * K))).astype(jnp.float32),
        "refine_b": jnp.zeros((K,), jnp.float32),
    }


# ---------------------------------------------------------------------------
# Wrapper
# ---------------------------------------------------------------------------

def hierarchical_threshold_coupler(params, gpcm_betas, coral_taus, theta,
                                   alpha=None, *, return_info=True,
                                   enable_adaptive_weighting=True,
                                   tile_n=32768):
    """Forward pass matching HierarchicalThresholdCoupler.forward.

    gpcm_betas (B,S,K), coral_taus (K,), theta (B,S), alpha (B,S) or None.
    Returns (unified_thresholds, coupling_info); coupling_info is None when
    return_info=False (fast path, unified-only stores).
    """
    B, S, K = gpcm_betas.shape
    N = B * S
    f32 = jnp.float32
    if alpha is None:
        alpha = jnp.ones_like(theta)

    # keep bf16 inputs in bf16 for the DMA (cast in-register in the kernel)
    in_dt = jnp.promote_types(jnp.promote_types(gpcm_betas.dtype, theta.dtype),
                              alpha.dtype)
    if in_dt != jnp.bfloat16:
        in_dt = f32

    # ---- single feature-major slab (one concat+transpose+pad pass) ----
    x_nat = jnp.concatenate(
        [gpcm_betas.reshape(N, K).astype(in_dt),
         theta.reshape(N, 1).astype(in_dt),
         alpha.reshape(N, 1).astype(in_dt)], axis=-1)           # (N, K+2)
    x_t = x_nat.T                                               # (K+2, N)

    # ---- tile the row (lane) axis ----
    # Big tiles amortize per-grid-step overhead; cap so the grid keeps >=2
    # steps (v7x has 2 TensorCores sharded by "parallel") and lanes stay
    # 128-aligned. VMEM stays well under the 32 MiB limit at tile_n=32768.
    tile_req = max(128, _round_up(int(tile_n), 128))
    half_n = max(128, _round_up(pl.cdiv(N, 2), 128))
    tile_n = min(tile_req, half_n)
    n_pad = _round_up(N, tile_n)
    if n_pad != N:
        x_t = jnp.pad(x_t, ((0, 0), (0, n_pad - N)))
    grid = (n_pad // tile_n,)

    # ---- fold / pack parameters ----
    refine_w = params["refine_w"].astype(f32)                   # (K, 2K) torch layout
    w_beta = refine_w[:, :K]                                    # (K, K)
    # tau branch is row-invariant: folded exactly into the bias (do not undo).
    tau_bias = refine_w[:, K:] @ coral_taus.astype(f32) + params["refine_b"].astype(f32)
    rw = params["refinement_weights"].astype(f32)
    rb = params["refinement_bias"].astype(f32)
    if enable_adaptive_weighting:
        hvec = jnp.concatenate([params["aw_w1"].astype(f32),
                                params["aw_b1"].astype(f32)[:, None]], axis=1)  # (2K, 3)
        w2 = params["aw_w2"].astype(f32)                        # (K, 2K)
        b2 = params["aw_b2"].astype(f32)
    else:
        # z == 0 everywhere -> 0.5*tanh(0)+0.5 == 0.5, the module's constant weighting
        hvec = jnp.zeros((2 * K, 3), f32)
        w2 = jnp.zeros((K, 2 * K), f32)
        b2 = jnp.zeros((K,), f32)
    kvec = jnp.stack([tau_bias, rw, rb, b2], axis=1)            # (K, 4)

    # ---- specs ----
    x_spec = pl.BlockSpec((K + 2, tile_n), lambda i: (0, i))

    def const_spec(arr):
        return pl.BlockSpec(arr.shape, lambda i: (0, 0))        # VMEM-resident

    weight_args = (w_beta, kvec, hvec, w2)
    in_specs = [x_spec] + [const_spec(a) for a in weight_args]

    compiler_params = pltpu.CompilerParams(
        dimension_semantics=("parallel",),
        # safe on v5e/v6e (128 MiB physical) and v7x (64 MiB physical per TC)
        vmem_limit_bytes=32 * 1024 * 1024,
    )
    call_args = (x_t,) + weight_args

    if not return_info:
        unified_t = pl.pallas_call(
            _coupler_fast_kernel,
            out_shape=jax.ShapeDtypeStruct((K, n_pad), f32),
            grid=grid,
            in_specs=in_specs,
            out_specs=pl.BlockSpec((K, tile_n), lambda i: (0, i)),
            compiler_params=compiler_params,
        )(*call_args)
        return unified_t[:, :N].T.reshape(B, S, K), None

    stacked_t = pl.pallas_call(
        _coupler_full_kernel,
        out_shape=jax.ShapeDtypeStruct((4 * K, n_pad), f32),
        grid=grid,
        in_specs=in_specs,
        out_specs=pl.BlockSpec((4 * K, tile_n), lambda i: (0, i)),
        compiler_params=compiler_params,
    )(*call_args)

    # one transpose pass for all four diagnostics (instead of four)
    stacked = stacked_t[:, :N].T.reshape(B, S, 4 * K)
    unified = stacked[..., 0 * K:1 * K]
    scaled = stacked[..., 1 * K:2 * K]
    aw = stacked[..., 2 * K:3 * K]
    refinement = stacked[..., 3 * K:4 * K]

    coupling_info = {
        "gpcm_contribution": gpcm_betas.astype(f32),
        "coral_contribution": scaled,
        "adaptive_weights": aw,
        "refinement_raw": refinement,
        # constant content: produced in the wrapper, not stored by the kernel
        "coral_taus_expanded": jnp.broadcast_to(
            coral_taus.astype(f32)[None, None, :], (B, S, K)),
    }
    return unified, coupling_info


# ---------------------------------------------------------------------------
# Pure-JAX reference (for correctness checking)
# ---------------------------------------------------------------------------

def _reference(params, gpcm_betas, coral_taus, theta, alpha):
    B, S, K = gpcm_betas.shape
    taus_exp = jnp.broadcast_to(coral_taus[None, None, :], (B, S, K))
    combined = jnp.concatenate([gpcm_betas, taus_exp], axis=-1)
    refinement = jnp.tanh(combined @ params["refine_w"].T + params["refine_b"])
    scaled = params["refinement_weights"] * refinement + params["refinement_bias"]
    ctx = jnp.stack([theta, alpha], axis=-1)
    h = jnp.maximum(ctx @ params["aw_w1"].T + params["aw_b1"], 0.0)
    aw = jax.nn.sigmoid(h @ params["aw_w2"].T + params["aw_b2"])
    unified = gpcm_betas + aw * scaled
    return unified, scaled, aw, refinement, taus_exp


if __name__ == "__main__":
    B, S, K = 2, 8, 4
    key = jax.random.PRNGKey(0)
    kp, kb, kt, kth, ka, kb2, kth2, ka2 = jax.random.split(key, 8)

    params = init_params(kp, K)
    gpcm_betas = jax.random.normal(kb, (B, S, K), jnp.float32)
    coral_taus = jax.random.normal(kt, (K,), jnp.float32)
    theta = jax.random.normal(kth, (B, S), jnp.float32)
    alpha = jnp.abs(jax.random.normal(ka, (B, S), jnp.float32)) + 0.5

    tol = dict(atol=1e-5, rtol=1e-5)

    # full path (kernel writes the stacked unified + diagnostics slab)
    unified, info = hierarchical_threshold_coupler(
        params, gpcm_betas, coral_taus, theta, alpha, return_info=True)
    unified = jax.block_until_ready(unified)

    # fast path (kernel writes unified only)
    unified_fast, _ = hierarchical_threshold_coupler(
        params, gpcm_betas, coral_taus, theta, alpha, return_info=False)
    unified_fast = jax.block_until_ready(unified_fast)

    ref_u, ref_s, ref_aw, ref_r, ref_t = _reference(
        params, gpcm_betas, coral_taus, theta, alpha)

    assert jnp.allclose(unified, ref_u, **tol), "unified mismatch"
    assert jnp.allclose(unified_fast, ref_u, **tol), "fast-path unified mismatch"
    assert jnp.allclose(info["coral_contribution"], ref_s, **tol), "scaled mismatch"
    assert jnp.allclose(info["adaptive_weights"], ref_aw, **tol), "aw mismatch"
    assert jnp.allclose(info["refinement_raw"], ref_r, **tol), "refinement mismatch"
    assert jnp.allclose(info["coral_taus_expanded"], ref_t, **tol), "taus_exp mismatch"
    assert unified.shape == (B, S, K)
    assert info["adaptive_weights"].shape == (B, S, K)

    # disabled adaptive weighting -> constant 0.5 weighting (handled via zeroed weights)
    unified_noaw, _ = hierarchical_threshold_coupler(
        params, gpcm_betas, coral_taus, theta, alpha,
        return_info=False, enable_adaptive_weighting=False)
    unified_noaw = jax.block_until_ready(unified_noaw)
    assert jnp.allclose(unified_noaw, gpcm_betas + 0.5 * ref_s, **tol), "no-aw mismatch"

    # larger case exercising multi-step grid + ragged padding (N=800, tile_n=128 -> 7 steps)
    B2, S2 = 4, 200
    gb2 = jax.random.normal(kb2, (B2, S2, K), jnp.float32)
    th2 = jax.random.normal(kth2, (B2, S2), jnp.float32)
    al2 = jnp.abs(jax.random.normal(ka2, (B2, S2), jnp.float32)) + 0.5
    u2, info2 = hierarchical_threshold_coupler(
        params, gb2, coral_taus, th2, al2, return_info=True, tile_n=128)
    u2 = jax.block_until_ready(u2)
    u2_fast, _ = hierarchical_threshold_coupler(
        params, gb2, coral_taus, th2, al2, return_info=False)   # default tile_n path
    u2_fast = jax.block_until_ready(u2_fast)
    ref_u2, ref_s2, ref_aw2, ref_r2, _ = _reference(params, gb2, coral_taus, th2, al2)
    assert jnp.allclose(u2, ref_u2, **tol), "multi-tile unified mismatch"
    assert jnp.allclose(u2_fast, ref_u2, **tol), "multi-tile fast unified mismatch"
    assert jnp.allclose(info2["adaptive_weights"], ref_aw2, **tol), "multi-tile aw mismatch"
    assert jnp.allclose(info2["refinement_raw"], ref_r2, **tol), "multi-tile refinement mismatch"

    print("KERNEL_OK")
</pallas_src>

<mosaic_0001>
module attributes {stable_mosaic.version = 11 : i64} {
  func.func @_coupler_full_kernel(%arg0: i32, %arg1: memref<6x128xf32, #tpu.memory_space<vmem>>, %arg2: memref<4x4xf32, #tpu.memory_space<vmem>>, %arg3: memref<4x4xf32, #tpu.memory_space<vmem>>, %arg4: memref<8x3xf32, #tpu.memory_space<vmem>>, %arg5: memref<4x8xf32, #tpu.memory_space<vmem>>, %arg6: memref<16x128xf32, #tpu.memory_space<vmem>>) attributes {dimension_semantics = [#tpu.dimension_semantics<parallel>], iteration_bounds = array<i64: 1>, scalar_prefetch = 0 : i64, scratch_operands = 0 : i64, tpu.core_type = #tpu.core_type<tc>, window_params = [{transform_indices = @transform_0, window_bounds = array<i64: 6, 128>}, {pipeline_mode = #tpu.pipeline_mode<synchronous>, transform_indices = @transform_1, window_bounds = array<i64: 4, 4>}, {pipeline_mode = #tpu.pipeline_mode<synchronous>, transform_indices = @transform_2, window_bounds = array<i64: 4, 4>}, {pipeline_mode = #tpu.pipeline_mode<synchronous>, transform_indices = @transform_3, window_bounds = array<i64: 8, 3>}, {pipeline_mode = #tpu.pipeline_mode<synchronous>, transform_indices = @transform_4, window_bounds = array<i64: 4, 8>}, {transform_indices = @transform_5, window_bounds = array<i64: 16, 128>}]} {
    %c0 = arith.constant 0 : index
    %c0_0 = arith.constant 0 : index
    %0 = vector.load %arg1[%c0, %c0_0] : memref<6x128xf32, #tpu.memory_space<vmem>>, vector<4x128xf32>
    %c4 = arith.constant 4 : index
    %c0_1 = arith.constant 0 : index
    %1 = vector.load %arg1[%c4, %c0_1] : memref<6x128xf32, #tpu.memory_space<vmem>>, vector<1x128xf32>
    %c5 = arith.constant 5 : index
    %c0_2 = arith.constant 0 : index
    %2 = vector.load %arg1[%c5, %c0_2] : memref<6x128xf32, #tpu.memory_space<vmem>>, vector<1x128xf32>
    %c0_3 = arith.constant 0 : index
    %c0_4 = arith.constant 0 : index
    %3 = vector.load %arg3[%c0_3, %c0_4] : memref<4x4xf32, #tpu.memory_space<vmem>>, vector<4x4xf32>
    %4 = vector.extract_strided_slice %3 {offsets = [0, 0], sizes = [4, 1], strides = [1, 1]} : vector<4x4xf32> to vector<4x1xf32>
    %5 = vector.extract_strided_slice %3 {offsets = [0, 1], sizes = [4, 1], strides = [1, 1]} : vector<4x4xf32> to vector<4x1xf32>
    %6 = vector.extract_strided_slice %3 {offsets = [0, 2], sizes = [4, 1], strides = [1, 1]} : vector<4x4xf32> to vector<4x1xf32>
    %7 = vector.extract_strided_slice %3 {offsets = [0, 3], sizes = [4, 1], strides = [1, 1]} : vector<4x4xf32> to vector<4x1xf32>
    %c0_5 = arith.constant 0 : index
    %c0_6 = arith.constant 0 : index
    %8 = vector.load %arg4[%c0_5, %c0_6] : memref<8x3xf32, #tpu.memory_space<vmem>>, vector<8x3xf32>
    %9 = vector.extract_strided_slice %8 {offsets = [0, 0], sizes = [8, 1], strides = [1, 1]} : vector<8x3xf32> to vector<8x1xf32>
    %10 = vector.extract_strided_slice %8 {offsets = [0, 1], sizes = [8, 1], strides = [1, 1]} : vector<8x3xf32> to vector<8x1xf32>
    %11 = vector.extract_strided_slice %8 {offsets = [0, 2], sizes = [8, 1], strides = [1, 1]} : vector<8x3xf32> to vector<8x1xf32>
    %c0_7 = arith.constant 0 : index
    %c0_8 = arith.constant 0 : index
    %12 = vector.load %arg2[%c0_7, %c0_8] : memref<4x4xf32, #tpu.memory_space<vmem>>, vector<4x4xf32>
    %cst = arith.constant dense<0.000000e+00> : vector<4x128xf32>
    %13 = tpu.matmul %12, %0, %cst {dimension_numbers = #tpu.dot_dimension_numbers<[1], [0], [0], [1], [0, 0, 1, 1], [], []>} : vector<4x4xf32>, vector<4x128xf32>, vector<4x128xf32> -> vector<4x128xf32>
    %14 = vector.broadcast %4 : vector<4x1xf32> to vector<4x128xf32>
    %15 = arith.addf %13, %14 : vector<4x128xf32>
    %16 = math.tanh %15 : vector<4x128xf32>
    %17 = vector.broadcast %5 : vector<4x1xf32> to vector<4x128xf32>
    %18 = arith.mulf %17, %16 : vector<4x128xf32>
    %19 = vector.broadcast %6 : vector<4x1xf32> to vector<4x128xf32>
    %20 = arith.addf %18, %19 : vector<4x128xf32>
    %21 = vector.broadcast %9 : vector<8x1xf32> to vector<8x128xf32>
    %22 = vector.broadcast %1 : vector<1x128xf32> to vector<8x128xf32>
    %23 = arith.mulf %21, %22 : vector<8x128xf32>
    %24 = vector.broadcast %10 : vector<8x1xf32> to vector<8x128xf32>
    %25 = vector.broadcast %2 : vector<1x128xf32> to vector<8x128xf32>
    %26 = arith.mulf %24, %25 : vector<8x128xf32>
    %27 = arith.addf %23, %26 : vector<8x128xf32>
    %28 = vector.broadcast %11 : vector<8x1xf32> to vector<8x128xf32>
    %29 = arith.addf %27, %28 : vector<8x128xf32>
    %cst_9 = arith.constant 0.000000e+00 : f32
    %30 = vector.broadcast %cst_9 : f32 to vector<8x128xf32>
    %31 = arith.maximumf %29, %30 : vector<8x128xf32>
    %c0_10 = arith.constant 0 : index
    %c0_11 = arith.constant 0 : index
    %32 = vector.load %arg5[%c0_10, %c0_11] : memref<4x8xf32, #tpu.memory_space<vmem>>, vector<4x8xf32>
    %cst_12 = arith.constant dense<0.000000e+00> : vector<4x128xf32>
    %33 = tpu.matmul %32, %31, %cst_12 {dimension_numbers = #tpu.dot_dimension_numbers<[1], [0], [0], [1], [0, 0, 1, 1], [], []>} : vector<4x8xf32>, vector<8x128xf32>, vector<4x128xf32> -> vector<4x128xf32>
    %34 = vector.broadcast %7 : vector<4x1xf32> to vector<4x128xf32>
    %35 = arith.addf %33, %34 : vector<4x128xf32>
    %cst_13 = arith.constant 5.000000e-01 : f32
    %36 = vector.broadcast %cst_13 : f32 to vector<4x128xf32>
    %37 = arith.mulf %36, %35 : vector<4x128xf32>
    %38 = math.tanh %37 : vector<4x128xf32>
    %cst_14 = arith.constant 5.000000e-01 : f32
    %39 = vector.broadcast %cst_14 : f32 to vector<4x128xf32>
    %40 = arith.mulf %39, %38 : vector<4x128xf32>
    %cst_15 = arith.constant 5.000000e-01 : f32
    %41 = vector.broadcast %cst_15 : f32 to vector<4x128xf32>
    %42 = arith.addf %40, %41 : vector<4x128xf32>
    %43 = arith.mulf %42, %20 : vector<4x128xf32>
    %44 = arith.addf %0, %43 : vector<4x128xf32>
    %c0_16 = arith.constant 0 : index
    %c0_17 = arith.constant 0 : index
    %45 = vector.load %arg6[%c0_16, %c0_17] : memref<16x128xf32, #tpu.memory_space<vmem>>, vector<4x128xf32>
    tpu.vector_store %arg6[%c0_16, %c0_17], %44 {strides = array<i32>} : memref<16x128xf32, #tpu.memory_space<vmem>>, vector<4x128xf32>,
    %c4_18 = arith.constant 4 : index
    %c0_19 = arith.constant 0 : index
    %46 = vector.load %arg6[%c4_18, %c0_19] : memref<16x128xf32, #tpu.memory_space<vmem>>, vector<4x128xf32>
    tpu.vector_store %arg6[%c4_18, %c0_19], %20 {strides = array<i32>} : memref<16x128xf32, #tpu.memory_space<vmem>>, vector<4x128xf32>,
    %c8 = arith.constant 8 : index
    %c0_20 = arith.constant 0 : index
    %47 = vector.load %arg6[%c8, %c0_20] : memref<16x128xf32, #tpu.memory_space<vmem>>, vector<4x128xf32>
    tpu.vector_store %arg6[%c8, %c0_20], %42 {strides = array<i32>} : memref<16x128xf32, #tpu.memory_space<vmem>>, vector<4x128xf32>,
    %c12 = arith.constant 12 : index
    %c0_21 = arith.constant 0 : index
    %48 = vector.load %arg6[%c12, %c0_21] : memref<16x128xf32, #tpu.memory_space<vmem>>, vector<4x128xf32>
    tpu.vector_store %arg6[%c12, %c0_21], %16 {strides = array<i32>} : memref<16x128xf32, #tpu.memory_space<vmem>>, vector<4x128xf32>,
    return
  }
  func.func @transform_0(%arg0: i32) -> (i32, i32) {
    %c0_i32 = arith.constant 0 : i32
    %c0_i32_0 = arith.constant 0 : i32
    return %c0_i32, %arg0 : i32, i32
  }
  func.func @transform_1(%arg0: i32) -> (i32, i32) {
    %c0_i32 = arith.constant 0 : i32
    %c0_i32_0 = arith.constant 0 : i32
    %c0_i32_1 = arith.constant 0 : i32
    return %c0_i32, %c0_i32_0 : i32, i32
  }
  func.func @transform_2(%arg0: i32) -> (i32, i32) {
    %c0_i32 = arith.constant 0 : i32
    %c0_i32_0 = arith.constant 0 : i32
    %c0_i32_1 = arith.constant 0 : i32
    return %c0_i32, %c0_i32_0 : i32, i32
  }
  func.func @transform_3(%arg0: i32) -> (i32, i32) {
    %c0_i32 = arith.constant 0 : i32
    %c0_i32_0 = arith.constant 0 : i32
    %c0_i32_1 = arith.constant 0 : i32
    return %c0_i32, %c0_i32_0 : i32, i32
  }
  func.func @transform_4(%arg0: i32) -> (i32, i32) {
    %c0_i32 = arith.constant 0 : i32
    %c0_i32_0 = arith.constant 0 : i32
    %c0_i32_1 = arith.constant 0 : i32
    return %c0_i32, %c0_i32_0 : i32, i32
  }
  func.func @transform_5(%arg0: i32) -> (i32, i32) {
    %c0_i32 = arith.constant 0 : i32
    %c0_i32_0 = arith.constant 0 : i32
    return %c0_i32, %arg0 : i32, i32
  }
}

</mosaic_0001>

<llo_original>
// kernel: tpu_custom_call.1
$region0: #{tpu_custom_call.1}
  #allocation0 [shape = 'u32[]', space=smem, size = 0x4, offset = 0x4, fixed_abs, tag = 'smem constant byte address 0x4 - core index']
  #allocation1 [shape = 'u32[72,128]{1,0:T(1,128)}', space=vmem, size = 0x9000, scoped, tag = 'internal scratch']
  %s0 = inlined_call_operand.vmem [shape: f32[6,128], index: 0, kind: input, shape index: {}]
  %s1 = inlined_call_operand.vmem [shape: f32[4,4], index: 1, kind: input, shape index: {}]
  %s2 = inlined_call_operand.hbm [shape: f32[4,4], index: 2, kind: input, shape index: {}]
  %s3 = inlined_call_operand.vmem [shape: f32[8,3], index: 3, kind: input, shape index: {}]
  %s4 = inlined_call_operand.hbm [shape: f32[4,8], index: 4, kind: input, shape index: {}]
  %s5 = inlined_call_operand.hbm [shape: f32[16,128], index: 5, kind: output, shape index: {}]
  %s6 = sld [smem:[#allocation0]]
  $region38: #{tpu_custom_call.1} parent=0
    _
  %s8 = ssub.s32 1, %s6
  %s9 = scalar_select 0, %s8, %s6
  $region1: #{tpu_custom_call.1} parent=0
    #allocation2 [shape = 'u8[2048]{0}', space=vmem, size = 0x800, scoped, tag = 'input window, operand 2, single buffered']
    #allocation3 [shape = 's32[1]{0}', space=sflag, size = 0x4, scoped, tag = 'scoped memory for tpu_custom_call.1']
    #allocation4 [shape = 's32[1]{0}', space=sflag, size = 0x4, scoped, tag = 'scoped memory for tpu_custom_call.1']
    #allocation5 [shape = 'u8[2048]{0}', space=vmem, size = 0x800, scoped, tag = 'input window, operand 4, single buffered']
    #allocation6 [shape = 's32[1]{0}', space=sflag, size = 0x4, scoped, tag = 'scoped memory for tpu_custom_call.1']
    #allocation7 [shape = 'u8[8192]{0}', space=vmem, size = 0x2000, scoped, tag = 'output window, operand 0, single buffered']
    %10 = vsyncpa [#allocation3], 0
    %11 = vsyncpa [#allocation6], 0
    %12 = vsyncpa [#allocation4], 0
    // Predicated region
    $region2: #{tpu_custom_call.1} parent=1 // pred_check
      _
    $region3: #{tpu_custom_call.1} parent=1 // pred_check_branch
      %14 = sbr.rel (0) target = $region5
    $region4: #{tpu_custom_call.1} parent=1 // pred_region
      _
    $region5: #{tpu_custom_call.1} parent=1 // pred_fallthru
      _
    // Predicated region
    $region6: #{tpu_custom_call.1} parent=1 // pred_check
      _
    $region7: #{tpu_custom_call.1} parent=1 // pred_check_branch
      %16 = sbr.rel (0) target = $region9
    $region8: #{tpu_custom_call.1} parent=1 // pred_region
      _
    $region9: #{tpu_custom_call.1} parent=1 // pred_fallthru
      _
    // Predicated region
    $region10: #{tpu_custom_call.1} parent=1 // pred_check
      _
    $region11: #{tpu_custom_call.1} parent=1 // pred_check_branch
      %18 = sbr.rel (0) target = $region13
    $region12: #{tpu_custom_call.1} parent=1 // pred_region
      %20 = vsyncadd [#allocation3], 0
      %s22 = sshll.u32 %s2, 4
      %s23 = int_to_ptr.hbm [resolvable:$true] %s22
      %s24 = sshll.u32 [#allocation2], 4
      %s25 = int_to_ptr.vmem [resolvable:$true] %s24
      %27 = dma.hbm_to_vmem [thread:$0]  %s23, 64, %s25, [#allocation3]
    $region13: #{tpu_custom_call.1} parent=1 // pred_fallthru
      _
    // Predicated region
    $region14: #{tpu_custom_call.1} parent=1 // pred_check
      _
    $region15: #{tpu_custom_call.1} parent=1 // pred_check_branch
      %29 = sbr.rel (0) target = $region17
    $region16: #{tpu_custom_call.1} parent=1 // pred_region
      _
    $region17: #{tpu_custom_call.1} parent=1 // pred_fallthru
      _
    // Predicated region
    $region18: #{tpu_custom_call.1} parent=1 // pred_check
      _
    $region19: #{tpu_custom_call.1} parent=1 // pred_check_branch
      %31 = sbr.rel (0) target = $region21
    $region20: #{tpu_custom_call.1} parent=1 // pred_region
      %33 = vsyncadd [#allocation6], 0
      %s35 = sshll.u32 %s4, 4
      %s36 = int_to_ptr.hbm [resolvable:$true] %s35
      %s37 = sshll.u32 [#allocation5], 4
      %s38 = int_to_ptr.vmem [resolvable:$true] %s37
      %40 = dma.hbm_to_vmem [thread:$0]  %s36, 64, %s38, [#allocation6]
    $region21: #{tpu_custom_call.1} parent=1 // pred_fallthru
      _
    // Predicated region
    $region22: #{tpu_custom_call.1} parent=1 // pred_check
      _
    $region23: #{tpu_custom_call.1} parent=1 // pred_check_branch
      %42 = sbr.rel (0) target = $region25
    $region24: #{tpu_custom_call.1} parent=1 // pred_region
      %44 = dma.done [#allocation3], 64
    $region25: #{tpu_custom_call.1} parent=1 // pred_fallthru
      _
    // Predicated region
    $region26: #{tpu_custom_call.1} parent=1 // pred_check
      _
    $region27: #{tpu_custom_call.1} parent=1 // pred_check_branch
      %46 = sbr.rel (0) target = $region29
    $region28: #{tpu_custom_call.1} parent=1 // pred_region
      %48 = dma.done [#allocation6], 64
    $region29: #{tpu_custom_call.1} parent=1 // pred_fallthru
      _
    %v49 = vld [vmem:[%s0] sm:$0xf]
    %v50 = vld [vmem:[%s0 + $0x4] sm:$0x1]
    %v51 = vld [vmem:[%s0 + $0x5] sm:$0x1]
    %v52 = vld [vmem:[#allocation2] sm:$0xf]
    %v53 = vld [vmem:[%s3] sm:$0xff]
    %v54 = vld [vmem:[%s1] sm:$0xf]
    %56 = vset.pattern.permute.xlu0 0
    %57 = vperm.xlu0 %56, %v52
    %v58 = vpop.permute.xlu0 %57
    %vm60 = vcmask 31744
    %v62 = vsel %vm60, %v54, 0
    %vm64 = vcmask 1043456
    %v66 = vsel %vm64, %v49, 0
    %68 = vmatpush.msra.mxu0 0.0
    %69 = vmatpush.msra.mxu0 0.0
    %70 = vmatpush.msra.mxu0 0.0
    %71 = vmatpush.msra.mxu0 0.0
    %72 = vmatpush.msra.mxu0 0.0
    %73 = vmatpush.msra.mxu0 0.0
    %74 = vmatpush.msra.mxu0 0.0
    %75 = vmatpush.msra.mxu0 0.0
    %76 = vmatpush.msra.mxu0 0.0
    %77 = vmatpush.msra.mxu0 0.0
    %78 = vmatpush.msra.mxu0 0.0
    %79 = vmatpush.msra.mxu0 0.0
    %80 = vmatpush.msra.mxu0 0.0
    %81 = vmatpush.msra.mxu0 0.0
    %82 = vmatpush.msra.mxu0 0.0
    %83 = vmatpush.msra.mxu0 %v66
    %84 = vmatmul.f32.gmra.mxu0 %v62
    %v85 = vpop.f32.mrf.mxu0
    %v86 = vadd.f32 %v58, %v85
    %87 = vdwg.mxu0
    %v88 = vtanh.pop %v86
    %89 = vset.pattern.permute.xlu0 1
    %90 = vperm.xlu0 %89, %v52
    %v91 = vpop.permute.xlu0 %90
    %v93 = vmul.f32 %v91, %v88
    %94 = vset.pattern.permute.xlu0 2
    %95 = vperm.xlu0 %94, %v52
    %v96 = vpop.permute.xlu0 %95
    %v98 = vadd.f32 %v93, %v96
    %100 = vset.pattern.permute.xlu0 0
    %101 = vperm.xlu0 %100, %v53
    %v102 = vpop.permute.xlu0 %101
    %v104 = vperm.slane %v50, 0
    %v105 = vmul.f32 %v102, %v104
    %106 = vset.pattern.permute.xlu0 1
    %107 = vperm.xlu0 %106, %v53
    %v108 = vpop.permute.xlu0 %107
    %v110 = vperm.slane %v51, 0
    %v111 = vmul.f32 %v108, %v110
    %v112 = vadd.f32 %v105, %v111
    %113 = vset.pattern.permute.xlu0 2
    %114 = vperm.xlu0 %113, %v53
    %v115 = vpop.permute.xlu0 %114
    %v117 = vadd.f32 %v112, %v115
    %v118 = vmax.f32 %v117, 0.0
    %v119 = vld [vmem:[#allocation5] sm:$0xf]
    %120 = vset.pattern.permute.xlu0 3
    %121 = vperm.xlu0 %120, %v52
    %v122 = vpop.permute.xlu0 %121
    %vm124 = vcmask 64512
    %v126 = vsel %vm124, %v119, 0
    %128 = vmatpush.msra.mxu0 0.0
    %129 = vmatpush.msra.mxu0 0.0
    %130 = vmatpush.msra.mxu0 0.0
    %131 = vmatpush.msra.mxu0 0.0
    %132 = vmatpush.msra.mxu0 0.0
    %133 = vmatpush.msra.mxu0 0.0
    %134 = vmatpush.msra.mxu0 0.0
    %135 = vmatpush.msra.mxu0 0.0
    %136 = vmatpush.msra.mxu0 0.0
    %137 = vmatpush.msra.mxu0 0.0
    %138 = vmatpush.msra.mxu0 0.0
    %139 = vmatpush.msra.mxu0 0.0
    %140 = vmatpush.msra.mxu0 0.0
    %141 = vmatpush.msra.mxu0 0.0
    %142 = vmatpush.msra.mxu0 0.0
    %143 = vmatpush.msra.mxu0 %v118
    %144 = vmatmul.f32.gmra.mxu0 %v126
    %v145 = vpop.f32.mrf.mxu0
    %v146 = vadd.f32 %v122, %v145
    %147 = vdwg.mxu0
    %v148 = vmul.f32 %v146, 0.5
    %v149 = vtanh.pop %v148
    %v150 = vmul.f32 %v149, 0.5
    %v151 = vadd.f32 %v150, 0.5
    %v152 = vmul.f32 %v151, %v98
    %v153 = vadd.f32 %v49, %v152
    %154 = vst [vmem:[#allocation7] sm:$0xf] %v153
    %155 = vst [vmem:[#allocation7 + $0x4] sm:$0xf] %v98
    %156 = vst [vmem:[#allocation7 + $0x8] sm:$0xf] %v151
    %157 = vst [vmem:[#allocation7 + $0xc] sm:$0xf] %v88
    // Predicated region
    $region30: #{tpu_custom_call.1} parent=1 // pred_check
      _
    $region31: #{tpu_custom_call.1} parent=1 // pred_check_branch
      %159 = sbr.rel (0) target = $region33
    $region32: #{tpu_custom_call.1} parent=1 // pred_region
      %161 = vsyncadd [#allocation4], 0
      %s162 = sshll.u32 [#allocation7], 4
      %s163 = int_to_ptr.vmem [resolvable:$true] %s162
      %s164 = sshll.u32 %s5, 4
      %s165 = int_to_ptr.hbm [resolvable:$true] %s164
      %170 = dma.vmem_to_hbm [thread:$0]  %s163, 256, %s165, [#allocation4], 128, 128, 8
    $region33: #{tpu_custom_call.1} parent=1 // pred_fallthru
      _
    // Predicated region
    $region34: #{tpu_custom_call.1} parent=1 // pred_check
      _
    $region35: #{tpu_custom_call.1} parent=1 // pred_check_branch
      %172 = sbr.rel (0) target = $region37
    $region36: #{tpu_custom_call.1} parent=1 // pred_region
      %174 = dma.done [#allocation4], 256
    $region37: #{tpu_custom_call.1} parent=1 // pred_fallthru
      _
    %175 = vsyncpa [#allocation3], 1
    %176 = vsyncpa [#allocation6], 1
    %177 = vsyncpa [#allocation4], 1

</llo_original>
